<compile_context>
chip_gen: v5e
topology: v5e:2x2
jax: 0.10.0
libtpu: 0.0.40
codegen_flags: <defaults>
</compile_context>

<pallas_src>
import functools

import jax
import jax.numpy as jnp
from jax import lax
from jax.experimental import pallas as pl
from jax.experimental.pallas import tpu as pltpu


# ----------------------------------------------------------------------------
# Host-side glue (no Pallas equivalent)
# ----------------------------------------------------------------------------
# TODO(synk): batch_tokenize is host-side string processing; kept in Python.
def batch_tokenize(batch, language_to_index, max_sequence_length,
                   START_TOKEN, END_TOKEN, PAD_TOKEN,
                   start_token=True, end_token=True):
    rows = []
    for sentence in batch:
        idxs = [language_to_index[tok] for tok in list(sentence)]
        if start_token:
            idxs.insert(0, language_to_index[START_TOKEN])
        if end_token:
            idxs.append(language_to_index[END_TOKEN])
        for _ in range(len(idxs), max_sequence_length):
            idxs.append(language_to_index[PAD_TOKEN])
        rows.append(idxs)
    return jnp.array(rows, dtype=jnp.int32)           # (B, max_seq)


def positional_encoding(d_model, max_sequence_length):
    """Exactly mirrors PositionalEncoding.forward() from the PyTorch spec."""
    even_i = jnp.arange(0, d_model, 2, dtype=jnp.float32)
    denominator = jnp.power(jnp.float32(10000.0), 2.0 * even_i / d_model)
    position = jnp.arange(max_sequence_length,
                          dtype=jnp.float32).reshape(max_sequence_length, 1)
    even_pe = jnp.sin(position / denominator)          # (S, d/2)
    odd_pe = jnp.cos(position / denominator)           # (S, d/2)
    stacked = jnp.stack([even_pe, odd_pe], axis=2)      # (S, d/2, 2)
    return stacked.reshape(max_sequence_length, d_model)


# ----------------------------------------------------------------------------
# Pallas kernel
# ----------------------------------------------------------------------------
def _sentence_embedding_kernel(ids_ref, table_ref, pe_ref, out_ref, rows_ref,
                               *, seed_key, drop_p, apply_dropout):
    # ids_ref:   (B*T,) int32 in SMEM (scalar prefetch)  -- flattened token ids
    # table_ref: (V, Dp) f32  VMEM-resident embedding table
    # pe_ref:    (T, Dp) f32  VMEM-resident positional encoding
    # out_ref:   (G, T, Dp)   output block (G batch elements fused per step)
    # rows_ref:  (G*T, Dp)    VMEM scratch holding the gathered rows
    G, T, Dp = out_ref.shape
    R = G * T
    V = table_ref.shape[0]
    base = pl.program_id(0) * R                       # first global row of this step

    # ---- embedding gather: per-row dynamic VMEM load driven by SMEM ids ----
    def gather_row(r, carry):
        tok = ids_ref[base + r]
        # Clamp to avoid silent OOB VMEM reads (nn.Embedding would raise).
        tok = jnp.clip(tok, 0, V - 1)
        rows_ref[r, :] = table_ref[tok, :]
        return carry
    lax.fori_loop(0, R, gather_row, 0)

    # ---- add positional encoding (broadcast over the fused batch group) ----
    y = rows_ref[...].reshape(G, T, Dp) + pe_ref[...][None, :, :]

    # ---- dropout(p) via counter-based hash RNG (no HBM mask, no hw PRNG) ----
    if apply_dropout:
        row_ids = base + lax.broadcasted_iota(jnp.int32, (R, Dp), 0)
        col_ids = lax.broadcasted_iota(jnp.int32, (R, Dp), 1)
        ctr = (row_ids * Dp + col_ids).astype(jnp.uint32)   # unique per element
        x = ctr ^ jnp.uint32(seed_key)
        x = x ^ (x >> 16)
        x = x * jnp.uint32(0x7FEB352D)
        x = x ^ (x >> 15)
        x = x * jnp.uint32(0x846CA68B)
        x = x ^ (x >> 16)
        r24 = (x >> 8).astype(jnp.int32)                     # uniform [0, 2^24)
        thresh = int(round(drop_p * float(1 << 24)))         # single int compare
        keep = (r24 >= thresh).reshape(G, T, Dp)             # P(keep) = 1 - p
        scale = jnp.float32(1.0 / (1.0 - drop_p))
        y = jnp.where(keep, y * scale, jnp.float32(0.0))

    out_ref[...] = y.astype(out_ref.dtype)


def _pick_batch_group(B, T, Dp, target_rows=256, bytes_budget=2 << 20):
    """Largest divisor of B whose (G*T, Dp) f32 tile fits the budget."""
    best = 1
    for g in range(1, B + 1):
        if B % g != 0:
            continue
        if g * T * Dp * 4 > bytes_budget:
            break
        best = g
        if g * T >= target_rows:
            break
    return best


def sentence_embedding_forward(token_ids, emb_table, pe, *, dropout_p=0.1,
                               training=False, seed=0):
    """Pallas forward of SentenceEmbedding (post-tokenization).

    token_ids: (B, T) int32 token indices (output of batch_tokenize)
    emb_table: (V, D) float32 embedding weights (nn.Embedding.weight)
    pe:        (T, D) float32 positional encoding
    """
    B, T = token_ids.shape
    V, D = emb_table.shape

    # Lane-dense output: pad d_model to a multiple of 128 (zeros, sliced off).
    Dp = ((D + 127) // 128) * 128
    if Dp != D:
        table_p = jnp.zeros((V, Dp), emb_table.dtype).at[:, :D].set(emb_table)
        pe_p = jnp.zeros((T, Dp), pe.dtype).at[:, :D].set(pe)
    else:
        table_p, pe_p = emb_table, pe

    G = _pick_batch_group(B, T, Dp)        # batch elements fused per grid step
    R = G * T
    ids_flat = token_ids.reshape(-1).astype(jnp.int32)

    apply_dropout = bool(training) and float(dropout_p) > 0.0
    seed_key = ((int(seed) * 2654435761) + 0x9E3779B9) & 0xFFFFFFFF

    kernel = functools.partial(
        _sentence_embedding_kernel,
        seed_key=seed_key, drop_p=float(dropout_p), apply_dropout=apply_dropout)

    bytes_accessed = B * T * 4 + V * Dp * 4 + T * Dp * 4 + B * T * Dp * 4

    out = pl.pallas_call(
        kernel,
        out_shape=jax.ShapeDtypeStruct((B, T, Dp), emb_table.dtype),
        grid_spec=pltpu.PrefetchScalarGridSpec(
            num_scalar_prefetch=1,                     # token ids -> SMEM
            grid=(B // G,),
            in_specs=[
                pl.BlockSpec((V, Dp), lambda n, ids: (0, 0)),   # table (resident)
                pl.BlockSpec((T, Dp), lambda n, ids: (0, 0)),   # pos. enc (resident)
            ],
            out_specs=pl.BlockSpec((G, T, Dp), lambda n, ids: (n, 0, 0)),
            scratch_shapes=[pltpu.VMEM((R, Dp), jnp.float32)],
        ),
        compiler_params=pltpu.CompilerParams(
            dimension_semantics=("parallel",)),        # safe in train & eval
        cost_estimate=pl.CostEstimate(
            flops=4 * B * T * Dp, transcendentals=0,
            bytes_accessed=bytes_accessed),
    )(ids_flat, table_p, pe_p)

    return out[..., :D] if Dp != D else out


# ----------------------------------------------------------------------------
# Demo / self-test
# ----------------------------------------------------------------------------
if __name__ == "__main__":
    max_sequence_length = 8
    d_model = 32
    START_TOKEN, END_TOKEN, PAD_TOKEN = "<S>", "<E>", "<P>"
    chars = list("abcdefghijklmnopqrstuvwxyz ")
    vocab = [START_TOKEN, END_TOKEN, PAD_TOKEN] + chars
    language_to_index = {tok: i for i, tok in enumerate(vocab)}

    key = jax.random.PRNGKey(0)
    emb_table = jax.random.normal(key, (len(vocab), d_model),
                                  dtype=jnp.float32) * 0.1

    batch = ["hello", "world"]
    ids = batch_tokenize(batch, language_to_index, max_sequence_length,
                         START_TOKEN, END_TOKEN, PAD_TOKEN,
                         start_token=True, end_token=True)      # (2, 8)
    pe = positional_encoding(d_model, max_sequence_length)       # (8, 32)

    # --- eval mode (dropout = identity): must match the pure-JAX reference ---
    out_eval = sentence_embedding_forward(ids, emb_table, pe,
                                          dropout_p=0.1, training=False)
    out_eval = jax.block_until_ready(out_eval)
    ref = emb_table[ids] + pe[None]                              # (2, 8, 32)
    assert out_eval.shape == (2, max_sequence_length, d_model)
    assert jnp.allclose(out_eval, ref, atol=1e-5, rtol=1e-5), \
        "eval-mode mismatch vs reference"

    # --- training mode: in-kernel dropout with p=0.1 ---
    p = 0.1
    out_train = sentence_embedding_forward(ids, emb_table, pe,
                                           dropout_p=p, training=True, seed=42)
    out_train = jax.block_until_ready(out_train)
    scaled = ref / (1.0 - p)
    is_zero = jnp.isclose(out_train, 0.0, atol=1e-6)
    is_kept = jnp.isclose(out_train, scaled, atol=1e-4, rtol=1e-4)
    assert bool(jnp.all(jnp.logical_or(is_zero, is_kept))), \
        "training-mode output is not a valid dropout of the reference"
    frac_dropped = float(jnp.mean(jnp.logical_and(is_zero,
                                                  jnp.logical_not(is_kept))))
    assert 0.0 < frac_dropped <= 0.35, \
        f"dropout rate {frac_dropped} far from p={p}"

    print("KERNEL_OK")
</pallas_src>

<mosaic_0001>
module attributes {stable_mosaic.version = 11 : i64} {
  func.func @_sentence_embedding_kernel(%arg0: i32, %arg1: memref<16xi32, #tpu.memory_space<smem>>, %arg2: memref<30x128xf32, #tpu.memory_space<vmem>>, %arg3: memref<8x128xf32, #tpu.memory_space<vmem>>, %arg4: memref<2x8x128xf32, #tpu.memory_space<vmem>>, %arg5: memref<16x128xf32, #tpu.memory_space<vmem>>) attributes {dimension_semantics = [#tpu.dimension_semantics<parallel>], iteration_bounds = array<i64: 1>, scalar_prefetch = 1 : i64, scratch_operands = 1 : i64, tpu.core_type = #tpu.core_type<tc>, window_params = [{pipeline_mode = #tpu.pipeline_mode<synchronous>, transform_indices = @transform_0, window_bounds = array<i64: 30, 128>}, {pipeline_mode = #tpu.pipeline_mode<synchronous>, transform_indices = @transform_1, window_bounds = array<i64: 8, 128>}, {transform_indices = @transform_2, window_bounds = array<i64: 2, 8, 128>}]} {
    %c16_i32 = arith.constant 16 : i32
    %0 = arith.muli %arg0, %c16_i32 : i32
    %c0_i32 = arith.constant 0 : i32
    %c16_i32_0 = arith.constant 16 : i32
    %1 = arith.addi %c0_i32, %c16_i32_0 : i32
    %c1_i32 = arith.constant 1 : i32
    scf.for %arg6 = %c0_i32 to %1 step %c1_i32  : i32 {
      %9 = arith.addi %0, %arg6 : i32
      %10 = arith.index_cast %9 : i32 to index
      %11 = memref.load %arg1[%10] : memref<16xi32, #tpu.memory_space<smem>>
      %c0_i32_8 = arith.constant 0 : i32
      %c29_i32 = arith.constant 29 : i32
      %12 = arith.maxsi %c0_i32_8, %11 : i32
      %13 = arith.minsi %c29_i32, %12 : i32
      %14 = arith.index_cast %13 : i32 to index
      %c0_9 = arith.constant 0 : index
      %15 = vector.load %arg2[%14, %c0_9] : memref<30x128xf32, #tpu.memory_space<vmem>>, vector<1x128xf32>
      %16 = vector.shape_cast %15 : vector<1x128xf32> to vector<128xf32>
      %17 = arith.index_cast %arg6 : i32 to index
      %c0_10 = arith.constant 0 : index
      %18 = vector.load %arg5[%17, %c0_10] : memref<16x128xf32, #tpu.memory_space<vmem>>, vector<1x128xf32>
      %19 = vector.shape_cast %18 : vector<1x128xf32> to vector<128xf32>
      %20 = vector.shape_cast %16 : vector<128xf32> to vector<1x128xf32>
      tpu.vector_store %arg5[%17, %c0_10], %20 {strides = array<i32>} : memref<16x128xf32, #tpu.memory_space<vmem>>, vector<1x128xf32>,
    }
    %c16_i32_1 = arith.constant 16 : i32
    %c0 = arith.constant 0 : index
    %c0_2 = arith.constant 0 : index
    %2 = vector.load %arg5[%c0, %c0_2] : memref<16x128xf32, #tpu.memory_space<vmem>>, vector<16x128xf32>
    %3 = vector.shape_cast %2 : vector<16x128xf32> to vector<2x8x128xf32>
    %c0_3 = arith.constant 0 : index
    %c0_4 = arith.constant 0 : index
    %4 = vector.load %arg3[%c0_3, %c0_4] : memref<8x128xf32, #tpu.memory_space<vmem>>, vector<8x128xf32>
    %5 = vector.shape_cast %4 : vector<8x128xf32> to vector<1x8x128xf32>
    %6 = vector.broadcast %5 : vector<1x8x128xf32> to vector<2x8x128xf32>
    %7 = arith.addf %3, %6 : vector<2x8x128xf32>
    %c0_5 = arith.constant 0 : index
    %c0_6 = arith.constant 0 : index
    %c0_7 = arith.constant 0 : index
    %8 = vector.load %arg4[%c0_5, %c0_6, %c0_7] : memref<2x8x128xf32, #tpu.memory_space<vmem>>, vector<2x8x128xf32>
    tpu.vector_store %arg4[%c0_5, %c0_6, %c0_7], %7 {strides = array<i32>} : memref<2x8x128xf32, #tpu.memory_space<vmem>>, vector<2x8x128xf32>,
    return
  }
  func.func @transform_0(%arg0: i32, %arg1: memref<16xi32, #tpu.memory_space<smem>>) -> (i32, i32) {
    %c0_i32 = arith.constant 0 : i32
    %c0_i32_0 = arith.constant 0 : i32
    %c0_i32_1 = arith.constant 0 : i32
    return %c0_i32, %c0_i32_0 : i32, i32
  }
  func.func @transform_1(%arg0: i32, %arg1: memref<16xi32, #tpu.memory_space<smem>>) -> (i32, i32) {
    %c0_i32 = arith.constant 0 : i32
    %c0_i32_0 = arith.constant 0 : i32
    %c0_i32_1 = arith.constant 0 : i32
    return %c0_i32, %c0_i32_0 : i32, i32
  }
  func.func @transform_2(%arg0: i32, %arg1: memref<16xi32, #tpu.memory_space<smem>>) -> (i32, i32, i32) {
    %c0_i32 = arith.constant 0 : i32
    %c0_i32_0 = arith.constant 0 : i32
    %c0_i32_1 = arith.constant 0 : i32
    return %arg0, %c0_i32, %c0_i32_0 : i32, i32, i32
  }
}

</mosaic_0001>

<llo_original>
// kernel: tpu_custom_call.1
$region0: #{tpu_custom_call.1}
  #allocation0 [shape = 'u32[]', space=smem, size = 0x4, offset = 0x4, fixed_abs, tag = 'smem constant byte address 0x4 - core index']
  #allocation1 [shape = 'u32[72,128]{1,0:T(1,128)}', space=vmem, size = 0x9000, scoped, tag = 'internal scratch']
  #allocation2 [shape = 'f32[16,128]{1,0:T(8,128)}', space=vmem, size = 0x2000, scoped, tag = 'scratch operand']
  #allocation3 [shape = 's32[1]{0}', space=sflag, size = 0x4, scoped, tag = 'scoped memory for tpu_custom_call.1']
  #allocation4 [shape = 'u8[512]{0}', space=smem, size = 0x200, scoped, tag = 'prefetched SMEM operand 0']
  %s0 = inlined_call_operand.hbm [shape: s32[16], index: 0, kind: input, shape index: {}]
  %s1 = inlined_call_operand.hbm [shape: f32[30,128], index: 1, kind: input, shape index: {}]
  %s2 = inlined_call_operand.hbm [shape: f32[8,128], index: 2, kind: input, shape index: {}]
  %s3 = inlined_call_operand.hbm [shape: f32[2,8,128], index: 3, kind: output, shape index: {}]
  %s4 = sld [smem:[#allocation0]]
  $region33: #{tpu_custom_call.1} parent=0
    _
  %s6 = ssub.s32 1, %s4
  %s7 = scalar_select 0, %s6, %s4
  %s9 = sshll.u32 %s0, 4
  %s10 = int_to_ptr.hbm [resolvable:$true] %s9
  %12 = dma.hbm_to_smem %s10, 16, [#allocation4], [#allocation3]
  %14 = dma.done [#allocation3], 16
  %15 = sfence
  $region1: #{tpu_custom_call.1} parent=0
    #allocation5 [shape = 'u8[16384]{0}', space=vmem, size = 0x4000, scoped, tag = 'input window, operand 1, single buffered']
    #allocation6 [shape = 's32[1]{0}', space=sflag, size = 0x4, scoped, tag = 'scoped memory for tpu_custom_call.1']
    #allocation7 [shape = 's32[1]{0}', space=sflag, size = 0x4, scoped, tag = 'scoped memory for tpu_custom_call.1']
    #allocation8 [shape = 'u8[4096]{0}', space=vmem, size = 0x1000, scoped, tag = 'input window, operand 2, single buffered']
    #allocation9 [shape = 's32[1]{0}', space=sflag, size = 0x4, scoped, tag = 'scoped memory for tpu_custom_call.1']
    #allocation10 [shape = 'u8[8192]{0}', space=vmem, size = 0x2000, scoped, tag = 'output window, operand 0, single buffered']
    %16 = vsyncpa [#allocation6], 0
    %17 = vsyncpa [#allocation9], 0
    %18 = vsyncpa [#allocation7], 0
    // Predicated region
    $region2: #{tpu_custom_call.1} parent=1 // pred_check
      _
    $region3: #{tpu_custom_call.1} parent=1 // pred_check_branch
      %20 = sbr.rel (0) target = $region5
    $region4: #{tpu_custom_call.1} parent=1 // pred_region
      %22 = vsyncadd [#allocation6], 0
      %s23 = sshll.u32 %s1, 4
      %s24 = int_to_ptr.hbm [resolvable:$true] %s23
      %s25 = sshll.u32 [#allocation5], 4
      %s26 = int_to_ptr.vmem [resolvable:$true] %s25
      %31 = dma.hbm_to_vmem [thread:$0]  %s24, 512, %s26, [#allocation6], 128, 128, 8
    $region5: #{tpu_custom_call.1} parent=1 // pred_fallthru
      _
    // Predicated region
    $region6: #{tpu_custom_call.1} parent=1 // pred_check
      _
    $region7: #{tpu_custom_call.1} parent=1 // pred_check_branch
      %33 = sbr.rel (0) target = $region9
    $region8: #{tpu_custom_call.1} parent=1 // pred_region
      %35 = vsyncadd [#allocation9], 0
      %s37 = sshll.u32 %s2, 4
      %s38 = int_to_ptr.hbm [resolvable:$true] %s37
      %s39 = sshll.u32 [#allocation8], 4
      %s40 = int_to_ptr.vmem [resolvable:$true] %s39
      %42 = dma.hbm_to_vmem [thread:$0]  %s38, 128, %s40, [#allocation9]
    $region9: #{tpu_custom_call.1} parent=1 // pred_fallthru
      _
    // Predicated region
    $region10: #{tpu_custom_call.1} parent=1 // pred_check
      _
    $region11: #{tpu_custom_call.1} parent=1 // pred_check_branch
      %44 = sbr.rel (0) target = $region13
    $region12: #{tpu_custom_call.1} parent=1 // pred_region
      %46 = dma.done [#allocation6], 512
    $region13: #{tpu_custom_call.1} parent=1 // pred_fallthru
      _
    // Predicated region
    $region14: #{tpu_custom_call.1} parent=1 // pred_check
      _
    $region15: #{tpu_custom_call.1} parent=1 // pred_check_branch
      %48 = sbr.rel (0) target = $region17
    $region16: #{tpu_custom_call.1} parent=1 // pred_region
      %50 = dma.done [#allocation9], 128
    $region17: #{tpu_custom_call.1} parent=1 // pred_fallthru
      _
    %s51 = smul.u32 0, 16
    loop: start=0, step=1, limit=16
    $region18: #{tpu_custom_call.1} parent=1 // loop_pre_header
      _
    $region19: #{tpu_custom_call.1} parent=1 // loop_header
      %s53 = sphi 0, %s57
      %p54 = scmp.ge.s32.totalorder %s53, 16
    $region20: #{tpu_custom_call.1} parent=1 // loop_header_branch
      %56 = sbr.rel (%p54) target = $region24
    $region21: #{tpu_custom_call.1} parent=1 // loop_body
      %s58 = sadd.s32 %s51, %s53
      %s59 = sld [smem:[#allocation4 + %s58]]
      %p60 = scmp.gt.s32.totalorder %s59, 0
      %s61 = scalar_select %p60, %s59, 0
      %p62 = scmp.lt.s32.totalorder %s61, 29
      %s63 = scalar_select %p62, %s61, 29
      %s64 = scalar_lea.vmem [#allocation5], %s63
      %v65 = vld [vmem:[%s64] sm:$0x1]
      %s66 = scalar_lea.vmem [#allocation2], %s53
      %67 = vst [vmem:[%s66] sm:$0x1] %v65
    $region22: #{tpu_custom_call.1} parent=1 // loop_footer
      %s57 = sadd.s32 1, %s53
    $region23: #{tpu_custom_call.1} parent=1 // loop_footer_branch
      %52 = sbr.rel target = $region19
    $region24: #{tpu_custom_call.1} parent=1 // loop_exit
      _
    %v68 = vld [vmem:[#allocation2] sm:$0xff]
    %v69 = vld [vmem:[#allocation2 + $0x8] sm:$0xff]
    %v70 = vld [vmem:[#allocation8] sm:$0xff]
    %v71 = vadd.f32 %v68, %v70
    %v72 = vadd.f32 %v69, %v70
    %73 = vst [vmem:[#allocation10] sm:$0xff] %v71
    %74 = vst [vmem:[#allocation10 + $0x8] sm:$0xff] %v72
    // Predicated region
    $region25: #{tpu_custom_call.1} parent=1 // pred_check
      _
    $region26: #{tpu_custom_call.1} parent=1 // pred_check_branch
      %76 = sbr.rel (0) target = $region28
    $region27: #{tpu_custom_call.1} parent=1 // pred_region
      %78 = vsyncadd [#allocation7], 0
      %s79 = sshll.u32 [#allocation10], 4
      %s80 = int_to_ptr.vmem [resolvable:$true] %s79
      %s81 = sshll.u32 %s3, 4
      %s82 = int_to_ptr.hbm [resolvable:$true] %s81
      %87 = dma.vmem_to_hbm [thread:$0]  %s80, 256, %s82, [#allocation7], 128, 128, 8
    $region28: #{tpu_custom_call.1} parent=1 // pred_fallthru
      _
    // Predicated region
    $region29: #{tpu_custom_call.1} parent=1 // pred_check
      _
    $region30: #{tpu_custom_call.1} parent=1 // pred_check_branch
      %89 = sbr.rel (0) target = $region32
    $region31: #{tpu_custom_call.1} parent=1 // pred_region
      %91 = dma.done [#allocation7], 256
    $region32: #{tpu_custom_call.1} parent=1 // pred_fallthru
      _
    %92 = vsyncpa [#allocation6], 1
    %93 = vsyncpa [#allocation9], 1
    %94 = vsyncpa [#allocation7], 1

</llo_original>
